<compile_context>
chip_gen: v7x
topology: tpu7x:2x2x1
jax: 0.10.0
libtpu: 0.0.40
codegen_flags: <defaults>
</compile_context>

<pallas_src>
import functools

import jax
import jax.numpy as jnp
from jax.experimental import pallas as pl
from jax.experimental.pallas import tpu as pltpu

SUBLANE = 8
MIN_GRID_STEPS = 8  # enough steps to balance v7x's 2 TensorCores


def _round_up(n: int, m: int) -> int:
    return (n + m - 1) // m * m


def qnetwork_kernel(x_ref, w1_ref, b1_ref, w2_ref, b2_ref, o_ref):
    """y = relu(x @ W1 + b1) @ W2 + b2, fully fused in VMEM, f32 accumulation."""
    h = jnp.dot(x_ref[...], w1_ref[...],
                preferred_element_type=jnp.float32)        # (TB, 64) f32
    h = jnp.maximum(h + b1_ref[...], 0.0)                  # bias + ReLU
    y = jnp.dot(h, w2_ref[...],
                preferred_element_type=jnp.float32)        # (TB, out_f) f32
    o_ref[...] = (y + b2_ref[...]).astype(o_ref.dtype)


def _cost_estimate(B, in_f, hidden, out_f):
    flops = 2 * B * (in_f * hidden + hidden * out_f)
    bytes_accessed = 4 * (B * in_f + B * out_f
                          + in_f * hidden + hidden
                          + hidden * out_f + out_f)
    return pl.CostEstimate(flops=flops, transcendentals=0,
                           bytes_accessed=bytes_accessed)


@functools.partial(jax.jit, static_argnames=("block_b",))
def qnetwork_forward(x, w1, b1, w2, b2, *, block_b=2048):
    """Forward pass of QNetwork.

    x : (B, in) f32            activations
    w1: (in, 64),  b1: (1, 64)   -- fc1 (weight transposed vs. PyTorch layout)
    w2: (64, out), b2: (1, out)  -- fc2 (weight transposed vs. PyTorch layout)
    block_b: max batch tile; batches <= block_b use the single-shot no-grid path.
    """
    B, in_f = x.shape
    hidden = w1.shape[1]
    out_f = w2.shape[1]
    cost = _cost_estimate(B, in_f, hidden, out_f)

    if B <= block_b:
        # Small batch: one fused invocation, whole operands resident in VMEM,
        # no grid -> no per-step pipeline overhead (dominant cost at B ~ 4 is
        # launch overhead, so zero extra wrapper-side XLA ops).
        return pl.pallas_call(
            qnetwork_kernel,
            out_shape=jax.ShapeDtypeStruct((B, out_f), x.dtype),
            in_specs=[pl.BlockSpec(memory_space=pltpu.MemorySpace.VMEM)] * 5,
            out_specs=pl.BlockSpec(memory_space=pltpu.MemorySpace.VMEM),
            cost_estimate=cost,
        )(x, w1, b1, w2, b2)

    # Large batch: tile the batch axis.  Pick the tile from B so there are at
    # least MIN_GRID_STEPS roughly-equal steps (balanced across v7x's 2 TCs),
    # capped at block_b and rounded to a sublane multiple.  Weights/biases use
    # constant index_maps so they stay VMEM-resident across grid steps while
    # x / out tiles are double-buffered.  The grid is cdiv(B, tb): the ragged
    # final block reads undefined rows past B (each output row depends only on
    # its own input row) and Pallas discards the out-of-bounds writes.
    tb = min(block_b, _round_up(pl.cdiv(B, MIN_GRID_STEPS), SUBLANE))
    grid = (pl.cdiv(B, tb),)

    return pl.pallas_call(
        qnetwork_kernel,
        out_shape=jax.ShapeDtypeStruct((B, out_f), x.dtype),
        grid=grid,
        in_specs=[
            pl.BlockSpec((tb, in_f), lambda i: (i, 0)),       # x tile
            pl.BlockSpec((in_f, hidden), lambda i: (0, 0)),   # W1 (resident)
            pl.BlockSpec((1, hidden), lambda i: (0, 0)),      # b1 (resident)
            pl.BlockSpec((hidden, out_f), lambda i: (0, 0)),  # W2 (resident)
            pl.BlockSpec((1, out_f), lambda i: (0, 0)),       # b2 (resident)
        ],
        out_specs=pl.BlockSpec((tb, out_f), lambda i: (i, 0)),
        compiler_params=pltpu.CompilerParams(
            dimension_semantics=("parallel",)),
        cost_estimate=cost,
    )(x, w1, b1, w2, b2)


def init_qnetwork_params(key, input_size, output_size, hidden=64):
    """Deterministic init mirroring nn.Linear's U(-1/sqrt(fan_in), 1/sqrt(fan_in)).

    Weights are stored pre-transposed ((in, out) instead of PyTorch's (out, in))
    once at init time, so the forward pass issues no layout/pad/cast ops.
    """
    k1, k2, k3, k4 = jax.random.split(key, 4)
    bound1 = 1.0 / jnp.sqrt(jnp.float32(input_size))
    bound2 = 1.0 / jnp.sqrt(jnp.float32(hidden))
    w1 = jax.random.uniform(k1, (input_size, hidden), jnp.float32, -bound1, bound1)
    b1 = jax.random.uniform(k2, (1, hidden), jnp.float32, -bound1, bound1)
    w2 = jax.random.uniform(k3, (hidden, output_size), jnp.float32, -bound2, bound2)
    b2 = jax.random.uniform(k4, (1, output_size), jnp.float32, -bound2, bound2)
    return w1, b1, w2, b2


def _reference(x, w1, b1, w2, b2):
    return jnp.maximum(x @ w1 + b1, 0.0) @ w2 + b2


if __name__ == "__main__":
    key = jax.random.PRNGKey(0)
    batch, input_size, output_size = 4, 32, 8

    kx, kp, kb = jax.random.split(key, 3)
    w1, b1, w2, b2 = init_qnetwork_params(kp, input_size, output_size)

    # --- Small batch (typical RL inference step): no-grid fused path. --------
    x = jax.random.normal(kx, (batch, input_size), jnp.float32)
    out = jax.block_until_ready(qnetwork_forward(x, w1, b1, w2, b2))
    ref = _reference(x, w1, b1, w2, b2)
    assert out.shape == (batch, output_size)
    assert jnp.allclose(out, ref, atol=1e-5, rtol=1e-5)

    # --- Training-style batch, deliberately NOT a multiple of the tile: -----
    # grid path with a ragged final block (OOB writes masked by Pallas).
    big_batch = 600
    xb = jax.random.normal(kb, (big_batch, input_size), jnp.float32)
    out_b = jax.block_until_ready(
        qnetwork_forward(xb, w1, b1, w2, b2, block_b=128))
    ref_b = _reference(xb, w1, b1, w2, b2)
    assert out_b.shape == (big_batch, output_size)
    assert jnp.allclose(out_b, ref_b, atol=1e-5, rtol=1e-5)

    print("KERNEL_OK")
</pallas_src>

<mosaic_0001>
module attributes {stable_mosaic.version = 11 : i64} {
  func.func @qnetwork_kernel(%arg0: memref<4x32xf32, #tpu.memory_space<vmem>>, %arg1: memref<32x64xf32, #tpu.memory_space<vmem>>, %arg2: memref<1x64xf32, #tpu.memory_space<vmem>>, %arg3: memref<64x8xf32, #tpu.memory_space<vmem>>, %arg4: memref<1x8xf32, #tpu.memory_space<vmem>>, %arg5: memref<4x8xf32, #tpu.memory_space<vmem>>) attributes {dimension_semantics = [], scalar_prefetch = 0 : i64, scratch_operands = 0 : i64, tpu.core_type = #tpu.core_type<tc>} {
    %c0 = arith.constant 0 : index
    %c0_0 = arith.constant 0 : index
    %0 = vector.load %arg0[%c0, %c0_0] : memref<4x32xf32, #tpu.memory_space<vmem>>, vector<4x32xf32>
    %c0_1 = arith.constant 0 : index
    %c0_2 = arith.constant 0 : index
    %1 = vector.load %arg1[%c0_1, %c0_2] : memref<32x64xf32, #tpu.memory_space<vmem>>, vector<32x64xf32>
    %cst = arith.constant dense<0.000000e+00> : vector<4x64xf32>
    %2 = tpu.matmul %0, %1, %cst {dimension_numbers = #tpu.dot_dimension_numbers<[1], [0], [0], [1], [0, 0, 1, 1], [], []>} : vector<4x32xf32>, vector<32x64xf32>, vector<4x64xf32> -> vector<4x64xf32>
    %c0_3 = arith.constant 0 : index
    %c0_4 = arith.constant 0 : index
    %3 = vector.load %arg2[%c0_3, %c0_4] : memref<1x64xf32, #tpu.memory_space<vmem>>, vector<1x64xf32>
    %4 = vector.broadcast %3 : vector<1x64xf32> to vector<4x64xf32>
    %5 = arith.addf %2, %4 : vector<4x64xf32>
    %cst_5 = arith.constant 0.000000e+00 : f32
    %6 = vector.broadcast %cst_5 : f32 to vector<4x64xf32>
    %7 = arith.maximumf %5, %6 : vector<4x64xf32>
    %c0_6 = arith.constant 0 : index
    %c0_7 = arith.constant 0 : index
    %8 = vector.load %arg3[%c0_6, %c0_7] : memref<64x8xf32, #tpu.memory_space<vmem>>, vector<64x8xf32>
    %cst_8 = arith.constant dense<0.000000e+00> : vector<4x8xf32>
    %9 = tpu.matmul %7, %8, %cst_8 {dimension_numbers = #tpu.dot_dimension_numbers<[1], [0], [0], [1], [0, 0, 1, 1], [], []>} : vector<4x64xf32>, vector<64x8xf32>, vector<4x8xf32> -> vector<4x8xf32>
    %c0_9 = arith.constant 0 : index
    %c0_10 = arith.constant 0 : index
    %10 = vector.load %arg4[%c0_9, %c0_10] : memref<1x8xf32, #tpu.memory_space<vmem>>, vector<1x8xf32>
    %11 = vector.broadcast %10 : vector<1x8xf32> to vector<4x8xf32>
    %12 = arith.addf %9, %11 : vector<4x8xf32>
    %c0_11 = arith.constant 0 : index
    %c0_12 = arith.constant 0 : index
    %13 = vector.load %arg5[%c0_11, %c0_12] : memref<4x8xf32, #tpu.memory_space<vmem>>, vector<4x8xf32>
    tpu.vector_store %arg5[%c0_11, %c0_12], %12 {strides = array<i32>} : memref<4x8xf32, #tpu.memory_space<vmem>>, vector<4x8xf32>,
    return
  }
}

</mosaic_0001>

<llo_original>
// kernel: qnetwork_forward.1
$region0: #{qnetwork_forward.1}
  #allocation0 [shape = 'u32[]', space=smem, size = 0x4, offset = 0x4, fixed_abs, tag = 'smem constant byte address 0x4 - core index']
  #allocation1 [shape = 'u32[144,128]{1,0:T(1,128)}', space=vmem, size = 0x12000, scoped, tag = 'internal scratch']
  %s0 = inlined_call_operand.vmem [shape: f32[4,32], index: 0, kind: input, shape index: {}]
  %s1 = inlined_call_operand.vmem [shape: f32[32,64], index: 1, kind: input, shape index: {}]
  %s2 = inlined_call_operand.vmem [shape: f32[1,64], index: 2, kind: input, shape index: {}]
  %s3 = inlined_call_operand.vmem [shape: f32[64,8], index: 3, kind: input, shape index: {}]
  %s4 = inlined_call_operand.vmem [shape: f32[1,8], index: 4, kind: input, shape index: {}]
  %s5 = inlined_call_operand.hbm [shape: f32[4,8], index: 5, kind: output, shape index: {}]
  %s6 = sld [smem:[#allocation0]]
  $region30: #{qnetwork_forward.1} parent=0
    _
  %s8 = ssub.s32 1, %s6
  %s9 = scalar_select 0, %s8, %s6
  $region1: #{qnetwork_forward.1} parent=0
    #allocation2 [shape = 'u8[2048]{0}', space=vmem, size = 0x800, scoped, tag = 'output window, operand 0, single buffered']
    #allocation3 [shape = 's32[1]{0}', space=sflag, size = 0x4, scoped, tag = 'scoped memory for qnetwork_forward.1']
    %10 = vsyncpa [#allocation3], 0
    // Predicated region
    $region2: #{qnetwork_forward.1} parent=1 // pred_check
      _
    $region3: #{qnetwork_forward.1} parent=1 // pred_check_branch
      %12 = sbr.rel (0) target = $region5
    $region4: #{qnetwork_forward.1} parent=1 // pred_region
      _
    $region5: #{qnetwork_forward.1} parent=1 // pred_fallthru
      _
    // Predicated region
    $region6: #{qnetwork_forward.1} parent=1 // pred_check
      _
    $region7: #{qnetwork_forward.1} parent=1 // pred_check_branch
      %14 = sbr.rel (0) target = $region9
    $region8: #{qnetwork_forward.1} parent=1 // pred_region
      _
    $region9: #{qnetwork_forward.1} parent=1 // pred_fallthru
      _
    // Predicated region
    $region10: #{qnetwork_forward.1} parent=1 // pred_check
      _
    $region11: #{qnetwork_forward.1} parent=1 // pred_check_branch
      %16 = sbr.rel (0) target = $region13
    $region12: #{qnetwork_forward.1} parent=1 // pred_region
      _
    $region13: #{qnetwork_forward.1} parent=1 // pred_fallthru
      _
    // Predicated region
    $region14: #{qnetwork_forward.1} parent=1 // pred_check
      _
    $region15: #{qnetwork_forward.1} parent=1 // pred_check_branch
      %18 = sbr.rel (0) target = $region17
    $region16: #{qnetwork_forward.1} parent=1 // pred_region
      _
    $region17: #{qnetwork_forward.1} parent=1 // pred_fallthru
      _
    // Predicated region
    $region18: #{qnetwork_forward.1} parent=1 // pred_check
      _
    $region19: #{qnetwork_forward.1} parent=1 // pred_check_branch
      %20 = sbr.rel (0) target = $region21
    $region20: #{qnetwork_forward.1} parent=1 // pred_region
      _
    $region21: #{qnetwork_forward.1} parent=1 // pred_fallthru
      _
    %v21 = vld [vmem:[%s0] sm:$0xf]
    %v22 = vld [vmem:[%s1] sm:$0xff]
    %v23 = vld [vmem:[%s1 + $0x8] sm:$0xff]
    %v24 = vld [vmem:[%s1 + $0x10] sm:$0xff]
    %v25 = vld [vmem:[%s1 + $0x18] sm:$0xff]
    %v26 = vld [vmem:[%s2] sm:$0x1]
    %v28 = vlaneseq
    %v29 = vshrl.u32 %v28, 7
    %v30 = vsub.s32 0, %v29
    %v31 = vrot.slane %v26, %v30
    %vm33 = vcmask 261120
    %v35 = vsel %vm33, %v21, 0
    %37 = vmatprep.subr.mxu0 0.0
    %38 = vmatpush1.msra.mxu0 %v22
    %39 = vmatprep.subr.mxu0 0.0
    %40 = vmatpush1.msra.mxu0 %v23
    %41 = vmatprep.subr.mxu0 0.0
    %42 = vmatpush1.msra.mxu0 %v24
    %43 = vmatprep.subr.mxu0 0.0
    %44 = vmatpush1.msra.mxu0 %v25
    %45 = vmatprep.subr.mxu0 0.0
    %46 = vmatpush1.msra.mxu0 0.0
    %47 = vmatprep.subr.mxu0 0.0
    %48 = vmatpush1.msra.mxu0 0.0
    %49 = vmatprep.subr.mxu0 0.0
    %50 = vmatpush1.msra.mxu0 0.0
    %51 = vmatprep.subr.mxu0 0.0
    %52 = vmatpush1.msra.mxu0 0.0
    %53 = vmatprep.subr.mxu0 0.0
    %54 = vmatpush1.msra.mxu0 0.0
    %55 = vmatprep.subr.mxu0 0.0
    %56 = vmatpush1.msra.mxu0 0.0
    %57 = vmatprep.subr.mxu0 0.0
    %58 = vmatpush1.msra.mxu0 0.0
    %59 = vmatprep.subr.mxu0 0.0
    %60 = vmatpush1.msra.mxu0 0.0
    %61 = vmatprep.subr.mxu0 0.0
    %62 = vmatpush1.msra.mxu0 0.0
    %63 = vmatprep.subr.mxu0 0.0
    %64 = vmatpush1.msra.mxu0 0.0
    %65 = vmatprep.subr.mxu0 0.0
    %66 = vmatpush1.msra.mxu0 0.0
    %67 = vmatprep.subr.mxu0 0.0
    %68 = vmatpush1.msra.mxu0 0.0
    %69 = vmatprep.subr.mxu0 0.0
    %70 = vmatpush1.msra.mxu0 0.0
    %71 = vmatprep.subr.mxu0 0.0
    %72 = vmatpush1.msra.mxu0 0.0
    %73 = vmatprep.subr.mxu0 0.0
    %74 = vmatpush1.msra.mxu0 0.0
    %75 = vmatprep.subr.mxu0 0.0
    %76 = vmatpush1.msra.mxu0 0.0
    %77 = vmatprep.subr.mxu0 0.0
    %78 = vmatpush1.msra.mxu0 0.0
    %79 = vmatprep.subr.mxu0 0.0
    %80 = vmatpush1.msra.mxu0 0.0
    %81 = vmatprep.subr.mxu0 0.0
    %82 = vmatpush1.msra.mxu0 0.0
    %83 = vmatprep.subr.mxu0 0.0
    %84 = vmatpush1.msra.mxu0 0.0
    %85 = vmatprep.subr.mxu0 0.0
    %86 = vmatpush1.msra.mxu0 0.0
    %87 = vmatprep.subr.mxu0 0.0
    %88 = vmatpush1.msra.mxu0 0.0
    %89 = vmatprep.subr.mxu0 0.0
    %90 = vmatpush1.msra.mxu0 0.0
    %91 = vmatprep.subr.mxu0 0.0
    %92 = vmatpush1.msra.mxu0 0.0
    %93 = vmatprep.subr.mxu0 0.0
    %94 = vmatpush1.msra.mxu0 0.0
    %95 = vmatprep.subr.mxu0 0.0
    %96 = vmatpush1.msra.mxu0 0.0
    %97 = vmatprep.subr.mxu0 0.0
    %98 = vmatpush1.msra.mxu0 0.0
    %99 = vmatprep.subr.mxu0 0.0
    %100 = vmatpush1.msra.mxu0 0.0
    %101 = vmatprep.mubr.f32.mxu0 0.0
    %102 = vmatmul.mubr.f32.gmra.mrb[0].mxu0 %v35
    %v103 = vpop.f32.mrb[0].mxu0
    %v104 = vadd.f32 %v31, %v103
    %v105 = vpop.f32.mrb[0].mxu0
    %106 = vdwg.mxu0
    %v107 = vmax.f32 %v104, 0.0
    %v108 = vld [vmem:[%s3] sm:$0xff]
    %v109 = vld [vmem:[%s3 + $0x8] sm:$0xff]
    %v110 = vld [vmem:[%s3 + $0x10] sm:$0xff]
    %v111 = vld [vmem:[%s3 + $0x18] sm:$0xff]
    %v112 = vld [vmem:[%s3 + $0x20] sm:$0xff]
    %v113 = vld [vmem:[%s3 + $0x28] sm:$0xff]
    %v114 = vld [vmem:[%s3 + $0x30] sm:$0xff]
    %v115 = vld [vmem:[%s3 + $0x38] sm:$0xff]
    %v116 = vld [vmem:[%s4] sm:$0x1]
    %v118 = vlaneseq
    %v119 = vshrl.u32 %v118, 7
    %v120 = vsub.s32 0, %v119
    %v121 = vrot.slane %v116, %v120
    %vm123 = vcmask 523264
    %v125 = vsel %vm123, %v107, 0
    %127 = vmatprep.subr.mxu0 0.0
    %128 = vmatpush1.msra.mxu0 %v108
    %129 = vmatprep.subr.mxu0 0.0
    %130 = vmatpush1.msra.mxu0 %v109
    %131 = vmatprep.subr.mxu0 0.0
    %132 = vmatpush1.msra.mxu0 %v110
    %133 = vmatprep.subr.mxu0 0.0
    %134 = vmatpush1.msra.mxu0 %v111
    %135 = vmatprep.subr.mxu0 0.0
    %136 = vmatpush1.msra.mxu0 %v112
    %137 = vmatprep.subr.mxu0 0.0
    %138 = vmatpush1.msra.mxu0 %v113
    %139 = vmatprep.subr.mxu0 0.0
    %140 = vmatpush1.msra.mxu0 %v114
    %141 = vmatprep.subr.mxu0 0.0
    %142 = vmatpush1.msra.mxu0 %v115
    %143 = vmatprep.subr.mxu0 0.0
    %144 = vmatpush1.msra.mxu0 0.0
    %145 = vmatprep.subr.mxu0 0.0
    %146 = vmatpush1.msra.mxu0 0.0
    %147 = vmatprep.subr.mxu0 0.0
    %148 = vmatpush1.msra.mxu0 0.0
    %149 = vmatprep.subr.mxu0 0.0
    %150 = vmatpush1.msra.mxu0 0.0
    %151 = vmatprep.subr.mxu0 0.0
    %152 = vmatpush1.msra.mxu0 0.0
    %153 = vmatprep.subr.mxu0 0.0
    %154 = vmatpush1.msra.mxu0 0.0
    %155 = vmatprep.subr.mxu0 0.0
    %156 = vmatpush1.msra.mxu0 0.0
    %157 = vmatprep.subr.mxu0 0.0
    %158 = vmatpush1.msra.mxu0 0.0
    %159 = vmatprep.subr.mxu0 0.0
    %160 = vmatpush1.msra.mxu0 0.0
    %161 = vmatprep.subr.mxu0 0.0
    %162 = vmatpush1.msra.mxu0 0.0
    %163 = vmatprep.subr.mxu0 0.0
    %164 = vmatpush1.msra.mxu0 0.0
    %165 = vmatprep.subr.mxu0 0.0
    %166 = vmatpush1.msra.mxu0 0.0
    %167 = vmatprep.subr.mxu0 0.0
    %168 = vmatpush1.msra.mxu0 0.0
    %169 = vmatprep.subr.mxu0 0.0
    %170 = vmatpush1.msra.mxu0 0.0
    %171 = vmatprep.subr.mxu0 0.0
    %172 = vmatpush1.msra.mxu0 0.0
    %173 = vmatprep.subr.mxu0 0.0
    %174 = vmatpush1.msra.mxu0 0.0
    %175 = vmatprep.subr.mxu0 0.0
    %176 = vmatpush1.msra.mxu0 0.0
    %177 = vmatprep.subr.mxu0 0.0
    %178 = vmatpush1.msra.mxu0 0.0
    %179 = vmatprep.subr.mxu0 0.0
    %180 = vmatpush1.msra.mxu0 0.0
    %181 = vmatprep.subr.mxu0 0.0
    %182 = vmatpush1.msra.mxu0 0.0
    %183 = vmatprep.subr.mxu0 0.0
    %184 = vmatpush1.msra.mxu0 0.0
    %185 = vmatprep.subr.mxu0 0.0
    %186 = vmatpush1.msra.mxu0 0.0
    %187 = vmatprep.subr.mxu0 0.0
    %188 = vmatpush1.msra.mxu0 0.0
    %189 = vmatprep.subr.mxu0 0.0
    %190 = vmatpush1.msra.mxu0 0.0
    %191 = vmatprep.mubr.f32.mxu0 0.0
    %192 = vmatmul.mubr.f32.gmra.mrb[0].mxu0 %v125
    %v193 = vpop.f32.mrb[0].mxu0
    %v194 = vadd.f32 %v121, %v193
    %v195 = vpop.f32.mrb[0].mxu0
    %196 = vdwg.mxu0
    %vm197 = vcmask 60416
    %198 = vst.msk [vmem:[#allocation2] sm:$0xf] %vm197, %v194
    // Predicated region
    $region22: #{qnetwork_forward.1} parent=1 // pred_check
      _
    $region23: #{qnetwork_forward.1} parent=1 // pred_check_branch
      %200 = sbr.rel (0) target = $region25
    $region24: #{qnetwork_forward.1} parent=1 // pred_region
      %s202 = ssub.s32 64, 64
      %203 = vsyncadd [#allocation3], %s202
      %s205 = sshll.u32 [#allocation2], 4
      %s206 = int_to_ptr.vmem [resolvable:$true] %s205
      %208 = dma.vmem_to_hbm [thread:$0]  %s206, 64, %s5, [#allocation3]
    $region25: #{qnetwork_forward.1} parent=1 // pred_fallthru
      _
    // Predicated region
    $region26: #{qnetwork_forward.1} parent=1 // pred_check
      _
    $region27: #{qnetwork_forward.1} parent=1 // pred_check_branch
      %210 = sbr.rel (0) target = $region29
    $region28: #{qnetwork_forward.1} parent=1 // pred_region
      %211 = dma.done [#allocation3], 64
    $region29: #{qnetwork_forward.1} parent=1 // pred_fallthru
      _
    %212 = vsyncpa [#allocation3], 1

</llo_original>
